<compile_context>
chip_gen: v6e
topology: v6e:2x2x1
jax: 0.10.0
libtpu: 0.0.40
codegen_flags: <defaults>
</compile_context>

<pallas_src>
import math
import functools

import jax
import jax.numpy as jnp
from jax.experimental import pallas as pl
from jax.experimental.pallas import tpu as pltpu


def _round_up(x, m):
    return (x + m - 1) // m * m


def multipath_channel_kernel(scale_ref, xr_ref, xi_ref, hr_ref, hi_ref,
                             nr_ref, ni_ref, or_ref, oi_ref, *, L, N):
    """One batch tile of the grouped complex correlation + scaled AWGN.

    xr/xi : (Bt, Tpad) real/imag planes of x (x in lanes [0, N), zeros after)
    hr/hi : (Bt, L)    channel taps
    nr/ni : (Bt, Tpad) unit complex-Gaussian noise (zeros in the padded tail)
    out   : (Bt, Tpad) lane-dense output; caller slices back to Nout = N + L - 1
    """
    xr = xr_ref[...]
    xi = xi_ref[...]
    hr = hr_ref[...]
    hi = hi_ref[...]

    acc_r = jnp.zeros_like(xr)
    acc_i = jnp.zeros_like(xi)

    # out[b, t] = sum_d x[b, t - d] * h[b, L-1-d]
    # (== grouped F.conv1d cross-correlation of the (L-1, L-1)-padded signal).
    # The lane rolls wrap into the trailing zero padding (Tpad >= N + L - 1), so
    # no masking is needed; the shifts run on the XLU and co-issue with the
    # VALU's complex MACs.
    for d in range(L):
        xs_r = pltpu.roll(xr, d, 1) if d else xr
        xs_i = pltpu.roll(xi, d, 1) if d else xi
        k = L - 1 - d
        hk_r = hr[:, k:k + 1]          # (Bt, 1) -> lane broadcast inside the MAC
        hk_i = hi[:, k:k + 1]
        acc_r = acc_r + xs_r * hk_r - xs_i * hk_i
        acc_i = acc_i + xs_r * hk_i + xs_i * hk_r

    # Per-batch signal power: the zero padding does not change the L2 norm, so
    # the full-lane reduction is exact even though the block is lane-padded.
    power = jnp.sqrt(jnp.sum(xr * xr + xi * xi, axis=1, keepdims=True)) * (
        1.0 / math.sqrt(N))
    noise_scale = power * scale_ref[0]          # scale_ref[0] = 1/sqrt(snr)

    or_ref[...] = acc_r + nr_ref[...] * noise_scale
    oi_ref[...] = acc_i + ni_ref[...] * noise_scale


def _pick_batch_tile(Bp, Tpad, max_tile_elems=700_000):
    # Largest power-of-two batch tile (multiple of 8, <= 256) that divides the
    # padded batch and keeps the double-buffered per-step footprint
    # (~ 2 * 6 * B_tile * Tpad * 4 B) comfortably inside v7x's 64 MiB VMEM.
    for cand in (256, 128, 64, 32, 16, 8):
        if cand <= Bp and Bp % cand == 0 and cand * Tpad <= max_tile_elems:
            return cand
    return 8


def multipath_channel(x, h, noise, snr_db):
    """x: (B, N) c64, h: (B, L) c64, noise: (B, N+L-1) c64 unit CN.  -> (B, N+L-1) c64."""
    B, N = x.shape
    L = h.shape[1]
    Nout = N + L - 1

    Tpad = _round_up(Nout, 128)          # lane-dense time axis (unmasked stores)
    Bp = _round_up(B, 8)                 # full vreg sublane occupancy
    B_tile = _pick_batch_tile(Bp, Tpad)
    grid = (Bp // B_tile,)

    # SNR as an SMEM scalar: no recompile when the channel SNR changes.
    inv_sqrt_snr = (1.0 / jnp.sqrt(10.0 ** (jnp.asarray(snr_db, jnp.float32) / 10.0))
                    ).reshape(1)

    # Real/imag planes, zero-padded to (Bp, Tpad).  x occupies lanes [0, N); the
    # trailing zeros double as the conv padding (the lane rolls wrap into them).
    # TODO(synk): fuse these producers into the pallas_call inputs
    # (CompilerParams(allow_input_fusion=...)) to avoid the extra HBM round-trip.
    def _planes(z, n_valid):
        zr = jnp.real(z).astype(jnp.float32)
        zi = jnp.imag(z).astype(jnp.float32)
        pad = ((0, Bp - B), (0, Tpad - n_valid))
        return jnp.pad(zr, pad), jnp.pad(zi, pad)

    xr, xi = _planes(x, N)
    nr, ni = _planes(noise, Nout)
    hr = jnp.pad(jnp.real(h).astype(jnp.float32), ((0, Bp - B), (0, 0)))
    hi = jnp.pad(jnp.imag(h).astype(jnp.float32), ((0, Bp - B), (0, 0)))

    wide_spec = pl.BlockSpec((B_tile, Tpad), lambda i: (i, 0))
    tap_spec = pl.BlockSpec((B_tile, L), lambda i: (i, 0))

    # Explicit VMEM budget: 6 time-wide planes + 2 tiny tap planes, double-buffered.
    per_step_bytes = (6 * B_tile * Tpad + 4 * B_tile * 128) * 4
    vmem_limit = int(min(max(2 * per_step_bytes + (2 << 20), 16 << 20), 56 << 20))

    flops = (8 * L + 6) * Bp * Tpad                       # complex MACs + noise add/scale
    bytes_accessed = (6 * Bp * Tpad + 4 * Bp * L) * 4

    kern = functools.partial(multipath_channel_kernel, L=L, N=N)
    out_re, out_im = pl.pallas_call(
        kern,
        grid=grid,
        out_shape=(jax.ShapeDtypeStruct((Bp, Tpad), jnp.float32),
                   jax.ShapeDtypeStruct((Bp, Tpad), jnp.float32)),
        in_specs=[pl.BlockSpec(memory_space=pltpu.MemorySpace.SMEM),   # 1/sqrt(snr)
                  wide_spec, wide_spec,                                # x planes
                  tap_spec, tap_spec,                                  # h planes
                  wide_spec, wide_spec],                               # noise planes
        out_specs=(wide_spec, wide_spec),
        compiler_params=pltpu.CompilerParams(
            dimension_semantics=("parallel",),
            vmem_limit_bytes=vmem_limit),
        cost_estimate=pl.CostEstimate(
            flops=int(flops), transcendentals=0,
            bytes_accessed=int(bytes_accessed)),
    )(inv_sqrt_snr, xr, xi, hr, hi, nr, ni)

    return jax.lax.complex(out_re[:B, :Nout], out_im[:B, :Nout])


def reference(x, h, noise, snr_db):
    B, N = x.shape
    L = h.shape[1]
    Nout = N + L - 1
    snr_lin = 10.0 ** (snr_db / 10.0)
    x_power = jnp.linalg.norm(x, axis=1) / math.sqrt(N)
    x_pad = jnp.pad(x, ((0, 0), (L - 1, L - 1)))
    out = sum(x_pad[:, k:k + Nout] * h[:, k:k + 1] for k in range(L))
    out = out + noise / math.sqrt(snr_lin) * x_power[:, None].astype(jnp.complex64)
    return out


if __name__ == "__main__":
    B, N, L = 2, 128, 4
    snr_db = 10.0

    key = jax.random.PRNGKey(0)
    kxr, kxi, khr, khi, knr, kni = jax.random.split(key, 6)

    # Deterministic inputs / "parameters".
    x = jax.lax.complex(jax.random.normal(kxr, (B, N), jnp.float32),
                        jax.random.normal(kxi, (B, N), jnp.float32))
    pdp = jnp.exp(-0.5 * jnp.arange(L, dtype=jnp.float32))          # power delay profile

    # sample_h: 1/sqrt(2)*(randn + 1j*randn) * PDP  (randn sampled here for determinism)
    h = (1.0 / math.sqrt(2.0)) * jax.lax.complex(
        jax.random.normal(khr, (B, L), jnp.float32),
        jax.random.normal(khi, (B, L), jnp.float32)) * pdp[None, :].astype(jnp.complex64)

    # unit complex Gaussian noise; SNR/power scaling happens inside the kernel
    Nout = N + L - 1
    noise = (1.0 / math.sqrt(2.0)) * jax.lax.complex(
        jax.random.normal(knr, (B, Nout), jnp.float32),
        jax.random.normal(kni, (B, Nout), jnp.float32))

    out = jax.jit(multipath_channel)(x, h, noise, snr_db)
    out = jax.block_until_ready(out)

    ref = reference(x, h, noise, snr_db)
    assert out.shape == (B, Nout) and out.dtype == jnp.complex64
    assert jnp.allclose(out, ref, atol=1e-4, rtol=1e-4)

    print("KERNEL_OK")
</pallas_src>

<mosaic_0001>
module attributes {stable_mosaic.version = 11 : i64} {
  func.func @multipath_channel_kernel(%arg0: i32, %arg1: memref<1xf32, #tpu.memory_space<smem>>, %arg2: memref<8x256xf32, #tpu.memory_space<vmem>>, %arg3: memref<8x256xf32, #tpu.memory_space<vmem>>, %arg4: memref<8x4xf32, #tpu.memory_space<vmem>>, %arg5: memref<8x4xf32, #tpu.memory_space<vmem>>, %arg6: memref<8x256xf32, #tpu.memory_space<vmem>>, %arg7: memref<8x256xf32, #tpu.memory_space<vmem>>, %arg8: memref<8x256xf32, #tpu.memory_space<vmem>>, %arg9: memref<8x256xf32, #tpu.memory_space<vmem>>) attributes {dimension_semantics = [#tpu.dimension_semantics<parallel>], iteration_bounds = array<i64: 1>, scalar_prefetch = 0 : i64, scratch_operands = 0 : i64, tpu.core_type = #tpu.core_type<tc>, window_params = [{transform_indices = @transform_0, window_bounds = array<i64: 1>}, {transform_indices = @transform_1, window_bounds = array<i64: 8, 256>}, {transform_indices = @transform_2, window_bounds = array<i64: 8, 256>}, {transform_indices = @transform_3, window_bounds = array<i64: 8, 4>}, {transform_indices = @transform_4, window_bounds = array<i64: 8, 4>}, {transform_indices = @transform_5, window_bounds = array<i64: 8, 256>}, {transform_indices = @transform_6, window_bounds = array<i64: 8, 256>}, {transform_indices = @transform_7, window_bounds = array<i64: 8, 256>}, {transform_indices = @transform_8, window_bounds = array<i64: 8, 256>}]} {
    %c0 = arith.constant 0 : index
    %c0_0 = arith.constant 0 : index
    %0 = vector.load %arg2[%c0, %c0_0] : memref<8x256xf32, #tpu.memory_space<vmem>>, vector<8x256xf32>
    %c0_1 = arith.constant 0 : index
    %c0_2 = arith.constant 0 : index
    %1 = vector.load %arg3[%c0_1, %c0_2] : memref<8x256xf32, #tpu.memory_space<vmem>>, vector<8x256xf32>
    %c0_3 = arith.constant 0 : index
    %c0_4 = arith.constant 0 : index
    %2 = vector.load %arg4[%c0_3, %c0_4] : memref<8x4xf32, #tpu.memory_space<vmem>>, vector<8x4xf32>
    %c0_5 = arith.constant 0 : index
    %c0_6 = arith.constant 0 : index
    %3 = vector.load %arg5[%c0_5, %c0_6] : memref<8x4xf32, #tpu.memory_space<vmem>>, vector<8x4xf32>
    %cst = arith.constant 0.000000e+00 : f32
    %4 = vector.broadcast %cst : f32 to vector<8x256xf32>
    %cst_7 = arith.constant 0.000000e+00 : f32
    %5 = vector.broadcast %cst_7 : f32 to vector<8x256xf32>
    %6 = vector.extract_strided_slice %2 {offsets = [0, 3], sizes = [8, 1], strides = [1, 1]} : vector<8x4xf32> to vector<8x1xf32>
    %7 = vector.extract_strided_slice %3 {offsets = [0, 3], sizes = [8, 1], strides = [1, 1]} : vector<8x4xf32> to vector<8x1xf32>
    %8 = vector.broadcast %6 : vector<8x1xf32> to vector<8x256xf32>
    %9 = arith.mulf %0, %8 : vector<8x256xf32>
    %10 = arith.addf %4, %9 : vector<8x256xf32>
    %11 = vector.broadcast %7 : vector<8x1xf32> to vector<8x256xf32>
    %12 = arith.mulf %1, %11 : vector<8x256xf32>
    %13 = arith.subf %10, %12 : vector<8x256xf32>
    %14 = vector.broadcast %7 : vector<8x1xf32> to vector<8x256xf32>
    %15 = arith.mulf %0, %14 : vector<8x256xf32>
    %16 = arith.addf %5, %15 : vector<8x256xf32>
    %17 = vector.broadcast %6 : vector<8x1xf32> to vector<8x256xf32>
    %18 = arith.mulf %1, %17 : vector<8x256xf32>
    %19 = arith.addf %16, %18 : vector<8x256xf32>
    %c1_i32 = arith.constant 1 : i32
    %20 = tpu.dynamic_rotate %0 by %c1_i32 dim 1 : vector<8x256xf32>, i32 -> vector<8x256xf32>
    %c1_i32_8 = arith.constant 1 : i32
    %21 = tpu.dynamic_rotate %1 by %c1_i32_8 dim 1 : vector<8x256xf32>, i32 -> vector<8x256xf32>
    %22 = vector.extract_strided_slice %2 {offsets = [0, 2], sizes = [8, 1], strides = [1, 1]} : vector<8x4xf32> to vector<8x1xf32>
    %23 = vector.extract_strided_slice %3 {offsets = [0, 2], sizes = [8, 1], strides = [1, 1]} : vector<8x4xf32> to vector<8x1xf32>
    %24 = vector.broadcast %22 : vector<8x1xf32> to vector<8x256xf32>
    %25 = arith.mulf %20, %24 : vector<8x256xf32>
    %26 = arith.addf %13, %25 : vector<8x256xf32>
    %27 = vector.broadcast %23 : vector<8x1xf32> to vector<8x256xf32>
    %28 = arith.mulf %21, %27 : vector<8x256xf32>
    %29 = arith.subf %26, %28 : vector<8x256xf32>
    %30 = vector.broadcast %23 : vector<8x1xf32> to vector<8x256xf32>
    %31 = arith.mulf %20, %30 : vector<8x256xf32>
    %32 = arith.addf %19, %31 : vector<8x256xf32>
    %33 = vector.broadcast %22 : vector<8x1xf32> to vector<8x256xf32>
    %34 = arith.mulf %21, %33 : vector<8x256xf32>
    %35 = arith.addf %32, %34 : vector<8x256xf32>
    %c2_i32 = arith.constant 2 : i32
    %36 = tpu.dynamic_rotate %0 by %c2_i32 dim 1 : vector<8x256xf32>, i32 -> vector<8x256xf32>
    %c2_i32_9 = arith.constant 2 : i32
    %37 = tpu.dynamic_rotate %1 by %c2_i32_9 dim 1 : vector<8x256xf32>, i32 -> vector<8x256xf32>
    %38 = vector.extract_strided_slice %2 {offsets = [0, 1], sizes = [8, 1], strides = [1, 1]} : vector<8x4xf32> to vector<8x1xf32>
    %39 = vector.extract_strided_slice %3 {offsets = [0, 1], sizes = [8, 1], strides = [1, 1]} : vector<8x4xf32> to vector<8x1xf32>
    %40 = vector.broadcast %38 : vector<8x1xf32> to vector<8x256xf32>
    %41 = arith.mulf %36, %40 : vector<8x256xf32>
    %42 = arith.addf %29, %41 : vector<8x256xf32>
    %43 = vector.broadcast %39 : vector<8x1xf32> to vector<8x256xf32>
    %44 = arith.mulf %37, %43 : vector<8x256xf32>
    %45 = arith.subf %42, %44 : vector<8x256xf32>
    %46 = vector.broadcast %39 : vector<8x1xf32> to vector<8x256xf32>
    %47 = arith.mulf %36, %46 : vector<8x256xf32>
    %48 = arith.addf %35, %47 : vector<8x256xf32>
    %49 = vector.broadcast %38 : vector<8x1xf32> to vector<8x256xf32>
    %50 = arith.mulf %37, %49 : vector<8x256xf32>
    %51 = arith.addf %48, %50 : vector<8x256xf32>
    %c3_i32 = arith.constant 3 : i32
    %52 = tpu.dynamic_rotate %0 by %c3_i32 dim 1 : vector<8x256xf32>, i32 -> vector<8x256xf32>
    %c3_i32_10 = arith.constant 3 : i32
    %53 = tpu.dynamic_rotate %1 by %c3_i32_10 dim 1 : vector<8x256xf32>, i32 -> vector<8x256xf32>
    %54 = vector.extract_strided_slice %2 {offsets = [0, 0], sizes = [8, 1], strides = [1, 1]} : vector<8x4xf32> to vector<8x1xf32>
    %55 = vector.extract_strided_slice %3 {offsets = [0, 0], sizes = [8, 1], strides = [1, 1]} : vector<8x4xf32> to vector<8x1xf32>
    %56 = vector.broadcast %54 : vector<8x1xf32> to vector<8x256xf32>
    %57 = arith.mulf %52, %56 : vector<8x256xf32>
    %58 = arith.addf %45, %57 : vector<8x256xf32>
    %59 = vector.broadcast %55 : vector<8x1xf32> to vector<8x256xf32>
    %60 = arith.mulf %53, %59 : vector<8x256xf32>
    %61 = arith.subf %58, %60 : vector<8x256xf32>
    %62 = vector.broadcast %55 : vector<8x1xf32> to vector<8x256xf32>
    %63 = arith.mulf %52, %62 : vector<8x256xf32>
    %64 = arith.addf %51, %63 : vector<8x256xf32>
    %65 = vector.broadcast %54 : vector<8x1xf32> to vector<8x256xf32>
    %66 = arith.mulf %53, %65 : vector<8x256xf32>
    %67 = arith.addf %64, %66 : vector<8x256xf32>
    %68 = arith.mulf %0, %0 : vector<8x256xf32>
    %69 = arith.mulf %1, %1 : vector<8x256xf32>
    %70 = arith.addf %68, %69 : vector<8x256xf32>
    %cst_11 = arith.constant dense<0.000000e+00> : vector<8xf32>
    %71 = vector.multi_reduction <add>, %70, %cst_11 [1] : vector<8x256xf32> to vector<8xf32>
    %72 = vector.shape_cast %71 : vector<8xf32> to vector<8x1xf32>
    %73 = math.sqrt %72 : vector<8x1xf32>
    %cst_12 = arith.constant 0.0883883461 : f32
    %74 = vector.broadcast %cst_12 : f32 to vector<8x1xf32>
    %75 = arith.mulf %73, %74 : vector<8x1xf32>
    %c0_13 = arith.constant 0 : index
    %76 = memref.load %arg1[%c0_13] : memref<1xf32, #tpu.memory_space<smem>>
    %77 = vector.broadcast %76 : f32 to vector<8x1xf32>
    %78 = arith.mulf %75, %77 : vector<8x1xf32>
    %c0_14 = arith.constant 0 : index
    %c0_15 = arith.constant 0 : index
    %79 = vector.load %arg6[%c0_14, %c0_15] : memref<8x256xf32, #tpu.memory_space<vmem>>, vector<8x256xf32>
    %80 = vector.broadcast %78 : vector<8x1xf32> to vector<8x256xf32>
    %81 = arith.mulf %79, %80 : vector<8x256xf32>
    %82 = arith.addf %61, %81 : vector<8x256xf32>
    %c0_16 = arith.constant 0 : index
    %c0_17 = arith.constant 0 : index
    %83 = vector.load %arg8[%c0_16, %c0_17] : memref<8x256xf32, #tpu.memory_space<vmem>>, vector<8x256xf32>
    tpu.vector_store %arg8[%c0_16, %c0_17], %82 {strides = array<i32>} : memref<8x256xf32, #tpu.memory_space<vmem>>, vector<8x256xf32>,
    %c0_18 = arith.constant 0 : index
    %c0_19 = arith.constant 0 : index
    %84 = vector.load %arg7[%c0_18, %c0_19] : memref<8x256xf32, #tpu.memory_space<vmem>>, vector<8x256xf32>
    %85 = vector.broadcast %78 : vector<8x1xf32> to vector<8x256xf32>
    %86 = arith.mulf %84, %85 : vector<8x256xf32>
    %87 = arith.addf %67, %86 : vector<8x256xf32>
    %c0_20 = arith.constant 0 : index
    %c0_21 = arith.constant 0 : index
    %88 = vector.load %arg9[%c0_20, %c0_21] : memref<8x256xf32, #tpu.memory_space<vmem>>, vector<8x256xf32>
    tpu.vector_store %arg9[%c0_20, %c0_21], %87 {strides = array<i32>} : memref<8x256xf32, #tpu.memory_space<vmem>>, vector<8x256xf32>,
    return
  }
  func.func @transform_0(%arg0: i32) -> i32 {
    %c0_i32 = arith.constant 0 : i32
    %c0_i32_0 = arith.constant 0 : i32
    return %c0_i32 : i32
  }
  func.func @transform_1(%arg0: i32) -> (i32, i32) {
    %c0_i32 = arith.constant 0 : i32
    %c0_i32_0 = arith.constant 0 : i32
    return %arg0, %c0_i32 : i32, i32
  }
  func.func @transform_2(%arg0: i32) -> (i32, i32) {
    %c0_i32 = arith.constant 0 : i32
    %c0_i32_0 = arith.constant 0 : i32
    return %arg0, %c0_i32 : i32, i32
  }
  func.func @transform_3(%arg0: i32) -> (i32, i32) {
    %c0_i32 = arith.constant 0 : i32
    %c0_i32_0 = arith.constant 0 : i32
    return %arg0, %c0_i32 : i32, i32
  }
  func.func @transform_4(%arg0: i32) -> (i32, i32) {
    %c0_i32 = arith.constant 0 : i32
    %c0_i32_0 = arith.constant 0 : i32
    return %arg0, %c0_i32 : i32, i32
  }
  func.func @transform_5(%arg0: i32) -> (i32, i32) {
    %c0_i32 = arith.constant 0 : i32
    %c0_i32_0 = arith.constant 0 : i32
    return %arg0, %c0_i32 : i32, i32
  }
  func.func @transform_6(%arg0: i32) -> (i32, i32) {
    %c0_i32 = arith.constant 0 : i32
    %c0_i32_0 = arith.constant 0 : i32
    return %arg0, %c0_i32 : i32, i32
  }
  func.func @transform_7(%arg0: i32) -> (i32, i32) {
    %c0_i32 = arith.constant 0 : i32
    %c0_i32_0 = arith.constant 0 : i32
    return %arg0, %c0_i32 : i32, i32
  }
  func.func @transform_8(%arg0: i32) -> (i32, i32) {
    %c0_i32 = arith.constant 0 : i32
    %c0_i32_0 = arith.constant 0 : i32
    return %arg0, %c0_i32 : i32, i32
  }
}

</mosaic_0001>

<llo_original>
// kernel: custom-call.2
$region0: #{custom-call.2}
  %s0 = inlined_call_operand.hbm [shape: c64[2,4], index: 0, kind: input, shape index: {}]
  %s1 = inlined_call_operand.vmem [shape: f32[2,4], index: 1, kind: output, shape index: {}]
  $region1: #{custom-call.2} parent=0
    #allocation0 [shape = 's32[1]{0}', space=sflag, size = 0x4, scoped, tag = 'scoped memory for custom-call.2']
    %2 = vsyncpa [#allocation0], 0
    %s3 = sshll.u32 %s1, 4
    %s4 = int_to_ptr.vmem [resolvable:$true] %s3
    %6 = dma.hbm_to_vmem [thread:$0]  %s0, 32, %s4, [#allocation0]
    %7 = dma.done [#allocation0], 32
    %8 = vsyncpa [#allocation0], 1

// kernel: custom-call.1
$region0: #{custom-call.1}
  %s0 = inlined_call_operand.hbm [shape: c64[2,128], index: 0, kind: input, shape index: {}]
  %s1 = inlined_call_operand.vmem [shape: f32[2,128], index: 1, kind: output, shape index: {}]
  %s2 = scalar_lea.hbm %s0, 32
  $region1: #{custom-call.1} parent=0
    #allocation0 [shape = 's32[1]{0}', space=sflag, size = 0x4, scoped, tag = 'scoped memory for custom-call.1']
    %3 = vsyncpa [#allocation0], 0
    %s4 = sshll.u32 %s1, 4
    %s5 = int_to_ptr.vmem [resolvable:$true] %s4
    %7 = dma.hbm_to_vmem [thread:$0]  %s2, 32, %s5, [#allocation0]
    %8 = dma.done [#allocation0], 32
    %9 = vsyncpa [#allocation0], 1

// kernel: custom-call
$region0: #{custom-call}
  %s0 = inlined_call_operand.hbm [shape: c64[2,128], index: 0, kind: input, shape index: {}]
  %s1 = inlined_call_operand.vmem [shape: f32[2,128], index: 1, kind: output, shape index: {}]
  $region1: #{custom-call} parent=0
    #allocation0 [shape = 's32[1]{0}', space=sflag, size = 0x4, scoped, tag = 'scoped memory for custom-call']
    %2 = vsyncpa [#allocation0], 0
    %s3 = sshll.u32 %s1, 4
    %s4 = int_to_ptr.vmem [resolvable:$true] %s3
    %6 = dma.hbm_to_vmem [thread:$0]  %s0, 32, %s4, [#allocation0]
    %7 = dma.done [#allocation0], 32
    %8 = vsyncpa [#allocation0], 1

// kernel: custom-call.3
$region0: #{custom-call.3}
  %s0 = inlined_call_operand.hbm [shape: c64[2,4], index: 0, kind: input, shape index: {}]
  %s1 = inlined_call_operand.vmem [shape: f32[2,4], index: 1, kind: output, shape index: {}]
  %s2 = scalar_lea.hbm %s0, 32
  $region1: #{custom-call.3} parent=0
    #allocation0 [shape = 's32[1]{0}', space=sflag, size = 0x4, scoped, tag = 'scoped memory for custom-call.3']
    %3 = vsyncpa [#allocation0], 0
    %s4 = sshll.u32 %s1, 4
    %s5 = int_to_ptr.vmem [resolvable:$true] %s4
    %7 = dma.hbm_to_vmem [thread:$0]  %s2, 32, %s5, [#allocation0]
    %8 = dma.done [#allocation0], 32
    %9 = vsyncpa [#allocation0], 1

// kernel: custom-call.4
$region0: #{custom-call.4}
  %s0 = inlined_call_operand.hbm [shape: c64[2,131], index: 0, kind: input, shape index: {}]
  %s1 = inlined_call_operand.vmem [shape: f32[2,131], index: 1, kind: output, shape index: {}]
  $region1: #{custom-call.4} parent=0
    #allocation0 [shape = 's32[1]{0}', space=sflag, size = 0x4, scoped, tag = 'scoped memory for custom-call.4']
    %2 = vsyncpa [#allocation0], 0
    %s3 = sshll.u32 %s1, 4
    %s4 = int_to_ptr.vmem [resolvable:$true] %s3
    %6 = dma.hbm_to_vmem [thread:$0]  %s0, 64, %s4, [#allocation0]
    %7 = dma.done [#allocation0], 64
    %8 = vsyncpa [#allocation0], 1

// kernel: custom-call.5
$region0: #{custom-call.5}
  %s0 = inlined_call_operand.hbm [shape: c64[2,131], index: 0, kind: input, shape index: {}]
  %s1 = inlined_call_operand.vmem [shape: f32[2,131], index: 1, kind: output, shape index: {}]
  %s2 = scalar_lea.hbm %s0, 64
  $region1: #{custom-call.5} parent=0
    #allocation0 [shape = 's32[1]{0}', space=sflag, size = 0x4, scoped, tag = 'scoped memory for custom-call.5']
    %3 = vsyncpa [#allocation0], 0
    %s4 = sshll.u32 %s1, 4
    %s5 = int_to_ptr.vmem [resolvable:$true] %s4
    %7 = dma.hbm_to_vmem [thread:$0]  %s2, 64, %s5, [#allocation0]
    %8 = dma.done [#allocation0], 64
    %9 = vsyncpa [#allocation0], 1

// kernel: custom-call.6
$region0: #{custom-call.6}
  %s0 = inlined_call_operand.vmem [shape: f32[2,131], index: 0, kind: input, shape index: {}]
  %s1 = inlined_call_operand.vmem [shape: f32[2,131], index: 1, kind: input, shape index: {}]
  %s2 = inlined_call_operand.hbm [shape: c64[2,131], index: 2, kind: output, shape index: {}]
  %s3 = scalar_lea.hbm %s2, 64
  $region1: #{custom-call.6} parent=0
    #allocation0 [shape = 's32[1]{0}', space=sflag, size = 0x4, scoped, tag = 'scoped memory for custom-call.6']
    %4 = vsyncpa [#allocation0], 0
    %s5 = sshll.u32 %s0, 4
    %s6 = int_to_ptr.vmem [resolvable:$true] %s5
    %8 = dma.vmem_to_hbm [thread:$0]  %s6, 64, %s2, [#allocation0]
    %9 = dma.done [#allocation0], 64
    %10 = vsyncpa [#allocation0], 1
  $region2: #{custom-call.6} parent=0
    #allocation1 [shape = 's32[1]{0}', space=sflag, size = 0x4, scoped, tag = 'scoped memory for custom-call.6']
    %11 = vsyncpa [#allocation1], 0
    %s12 = sshll.u32 %s1, 4
    %s13 = int_to_ptr.vmem [resolvable:$true] %s12
    %15 = dma.vmem_to_hbm [thread:$0]  %s13, 64, %s3, [#allocation1]
    %16 = dma.done [#allocation1], 64
    %17 = vsyncpa [#allocation1], 1

// kernel: multipath_channel.1
$region0: #{multipath_channel.1}
  #allocation0 [shape = 'u32[]', space=smem, size = 0x4, offset = 0x4, fixed_abs, tag = 'smem constant byte address 0x4 - core index']
  #allocation1 [shape = 'u32[144,128]{1,0:T(1,128)}', space=vmem, size = 0x12000, scoped, tag = 'internal scratch']
  #allocation2 [shape = 'f32[1]{0:T(128)S(6)}', space=smem, size = 0x200, scoped, tag = 'scoped memory for multipath_channel.1']
  %s0 = inlined_call_operand.<no memory space> [shape: f32[1], index: 0, kind: input, shape index: {}]
  %s1 = inlined_call_operand.vmem [shape: f32[8,256], index: 1, kind: input, shape index: {}]
  %s2 = inlined_call_operand.vmem [shape: f32[8,256], index: 2, kind: input, shape index: {}]
  %s3 = inlined_call_operand.vmem [shape: f32[8,4], index: 3, kind: input, shape index: {}]
  %s4 = inlined_call_operand.vmem [shape: f32[8,4], index: 4, kind: input, shape index: {}]
  %s5 = inlined_call_operand.vmem [shape: f32[8,256], index: 5, kind: input, shape index: {}]
  %s6 = inlined_call_operand.vmem [shape: f32[8,256], index: 6, kind: input, shape index: {}]
  %s7 = inlined_call_operand.vmem [shape: f32[8,256], index: 7, kind: output, shape index: {0}]
  %s8 = inlined_call_operand.vmem [shape: f32[8,256], index: 8, kind: output, shape index: {1}]
  %9 = xla_tuple %s7, %s8
  %s10 = sld [smem:[#allocation0]]
  $region46: #{multipath_channel.1} parent=0
    _
  %s12 = ssub.s32 1, %s10
  %s13 = scalar_select 0, %s12, %s10
  %14 = sst [smem:[#allocation2]] %s0
  // Predicated region
  $region2: #{multipath_channel.1} parent=0 // pred_check
    _
  $region3: #{multipath_channel.1} parent=0 // pred_check_branch
    %16 = sbr.rel (0) target = $region5
  $region4: #{multipath_channel.1} parent=0 // pred_region
    _
  $region5: #{multipath_channel.1} parent=0 // pred_fallthru
    _
  // Predicated region
  $region6: #{multipath_channel.1} parent=0 // pred_check
    _
  $region7: #{multipath_channel.1} parent=0 // pred_check_branch
    %18 = sbr.rel (0) target = $region9
  $region8: #{multipath_channel.1} parent=0 // pred_region
    _
  $region9: #{multipath_channel.1} parent=0 // pred_fallthru
    _
  // Predicated region
  $region10: #{multipath_channel.1} parent=0 // pred_check
    _
  $region11: #{multipath_channel.1} parent=0 // pred_check_branch
    %20 = sbr.rel (0) target = $region13
  $region12: #{multipath_channel.1} parent=0 // pred_region
    _
  $region13: #{multipath_channel.1} parent=0 // pred_fallthru
    _
  // Predicated region
  $region14: #{multipath_channel.1} parent=0 // pred_check
    _
  $region15: #{multipath_channel.1} parent=0 // pred_check_branch
    %22 = sbr.rel (0) target = $region17
  $region16: #{multipath_channel.1} parent=0 // pred_region
    _
  $region17: #{multipath_channel.1} parent=0 // pred_fallthru
    _
  // Predicated region
  $region18: #{multipath_channel.1} parent=0 // pred_check
    _
  $region19: #{multipath_channel.1} parent=0 // pred_check_branch
    %24 = sbr.rel (0) target = $region21
  $region20: #{multipath_channel.1} parent=0 // pred_region
    _
  $region21: #{multipath_channel.1} parent=0 // pred_fallthru
    _
  // Predicated region
  $region22: #{multipath_channel.1} parent=0 // pred_check
    _
  $region23: #{multipath_channel.1} parent=0 // pred_check_branch
    %26 = sbr.rel (0) target = $region25
  $region24: #{multipath_channel.1} parent=0 // pred_region
    _
  $region25: #{multipath_channel.1} parent=0 // pred_fallthru
    _
  // Predicated region
  $region26: #{multipath_channel.1} parent=0 // pred_check
    _
  $region27: #{multipath_channel.1} parent=0 // pred_check_branch
    %28 = sbr.rel (0) target = $region29
  $region28: #{multipath_channel.1} parent=0 // pred_region
    _
  $region29: #{multipath_channel.1} parent=0 // pred_fallthru
    _
  %v29 = vld [vmem:[%s1] sm:$0xff]
  %v30 = vld [vmem:[%s1 + $0x8] sm:$0xff]
  %v31 = vld [vmem:[%s2] sm:$0xff]
  %v32 = vld [vmem:[%s2 + $0x8] sm:$0xff]
  %v33 = vld [vmem:[%s3] sm:$0xff]
  %v34 = vld [vmem:[%s4] sm:$0xff]
  %36 = vset.pattern.permute.xlu0 3
  %37 = vperm.xlu0 %36, %v33
  %v38 = vpop.permute.xlu0 %37
  %v40 = vmul.f32 %v29, %v38
  %v41 = vmul.f32 %v30, %v38
  %v42 = vadd.f32 %v40, 0.0
  %v43 = vadd.f32 %v41, 0.0
  %45 = vset.pattern.permute.xlu0 3
  %46 = vperm.xlu0 %45, %v34
  %v47 = vpop.permute.xlu0 %46
  %v49 = vmul.f32 %v31, %v47
  %v50 = vmul.f32 %v32, %v47
  %v51 = vsub.f32 %v42, %v49
  %v52 = vsub.f32 %v43, %v50
  %v53 = vmul.f32 %v29, %v47
  %v54 = vmul.f32 %v30, %v47
  %v55 = vadd.f32 %v53, 0.0
  %v56 = vadd.f32 %v54, 0.0
  %v57 = vmul.f32 %v31, %v38
  %v58 = vmul.f32 %v32, %v38
  %v59 = vadd.f32 %v55, %v57
  %v60 = vadd.f32 %v56, %v58
  %61 = vrot.lane.b32.xlu0 %v29, 1
  %v62 = vpop.permute.xlu0 %61
  %63 = vrot.lane.b32.xlu0 %v30, 1
  %v64 = vpop.permute.xlu0 %63
  %v65 = vlaneseq
  %v66 = vand.u32 %v65, 127
  %vm67 = vcmp.lt.s32.totalorder %v66, 1
  %v68 = vsel %vm67, %v62, %v64
  %v69 = vsel %vm67, %v64, %v62
  %70 = vrot.lane.b32.xlu0 %v31, 1
  %v71 = vpop.permute.xlu0 %70
  %72 = vrot.lane.b32.xlu0 %v32, 1
  %v73 = vpop.permute.xlu0 %72
  %v74 = vsel %vm67, %v71, %v73
  %v75 = vsel %vm67, %v73, %v71
  %76 = vset.pattern.permute.xlu0 2
  %77 = vperm.xlu0 %76, %v33
  %v78 = vpop.permute.xlu0 %77
  %v80 = vmul.f32 %v69, %v78
  %v81 = vmul.f32 %v68, %v78
  %v82 = vadd.f32 %v51, %v80
  %v83 = vadd.f32 %v52, %v81
  %84 = vset.pattern.permute.xlu0 2
  %85 = vperm.xlu0 %84, %v34
  %v86 = vpop.permute.xlu0 %85
  %v88 = vmul.f32 %v75, %v86
  %v89 = vmul.f32 %v74, %v86
  %v90 = vsub.f32 %v82, %v88
  %v91 = vsub.f32 %v83, %v89
  %v92 = vmul.f32 %v69, %v86
  %v93 = vmul.f32 %v68, %v86
  %v94 = vadd.f32 %v59, %v92
  %v95 = vadd.f32 %v60, %v93
  %v96 = vmul.f32 %v75, %v78
  %v97 = vmul.f32 %v74, %v78
  %v98 = vadd.f32 %v94, %v96
  %v99 = vadd.f32 %v95, %v97
  %100 = vrot.lane.b32.xlu0 %v29, 2
  %v101 = vpop.permute.xlu0 %100
  %102 = vrot.lane.b32.xlu0 %v30, 2
  %v103 = vpop.permute.xlu0 %102
  %vm104 = vcmp.lt.s32.totalorder %v66, 2
  %v105 = vsel %vm104, %v101, %v103
  %v106 = vsel %vm104, %v103, %v101
  %107 = vrot.lane.b32.xlu0 %v31, 2
  %v108 = vpop.permute.xlu0 %107
  %109 = vrot.lane.b32.xlu0 %v32, 2
  %v110 = vpop.permute.xlu0 %109
  %v111 = vsel %vm104, %v108, %v110
  %v112 = vsel %vm104, %v110, %v108
  %113 = vset.pattern.permute.xlu0 1
  %114 = vperm.xlu0 %113, %v33
  %v115 = vpop.permute.xlu0 %114
  %v117 = vmul.f32 %v106, %v115
  %v118 = vmul.f32 %v105, %v115
  %v119 = vadd.f32 %v90, %v117
  %v120 = vadd.f32 %v91, %v118
  %121 = vset.pattern.permute.xlu0 1
  %122 = vperm.xlu0 %121, %v34
  %v123 = vpop.permute.xlu0 %122
  %v125 = vmul.f32 %v112, %v123
  %v126 = vmul.f32 %v111, %v123
  %v127 = vsub.f32 %v119, %v125
  %v128 = vsub.f32 %v120, %v126
  %v129 = vmul.f32 %v106, %v123
  %v130 = vmul.f32 %v105, %v123
  %v131 = vadd.f32 %v98, %v129
  %v132 = vadd.f32 %v99, %v130
  %v133 = vmul.f32 %v112, %v115
  %v134 = vmul.f32 %v111, %v115
  %v135 = vadd.f32 %v131, %v133
  %v136 = vadd.f32 %v132, %v134
  %137 = vrot.lane.b32.xlu0 %v29, 3
  %v138 = vpop.permute.xlu0 %137
  %139 = vrot.lane.b32.xlu0 %v30, 3
  %v140 = vpop.permute.xlu0 %139
  %vm141 = vcmp.lt.s32.totalorder %v66, 3
  %v142 = vsel %vm141, %v138, %v140
  %v143 = vsel %vm141, %v140, %v138
  %144 = vrot.lane.b32.xlu0 %v31, 3
  %v145 = vpop.permute.xlu0 %144
  %146 = vrot.lane.b32.xlu0 %v32, 3
  %v147 = vpop.permute.xlu0 %146
  %v148 = vsel %vm141, %v145, %v147
  %v149 = vsel %vm141, %v147, %v145
  %150 = vset.pattern.permute.xlu0 0
  %151 = vperm.xlu0 %150, %v33
  %v152 = vpop.permute.xlu0 %151
  %v154 = vmul.f32 %v143, %v152
  %v155 = vmul.f32 %v142, %v152
  %v156 = vadd.f32 %v127, %v154
  %v157 = vadd.f32 %v128, %v155
  %158 = vset.pattern.permute.xlu0 0
  %159 = vperm.xlu0 %158, %v34
  %v160 = vpop.permute.xlu0 %159
  %v162 = vmul.f32 %v149, %v160
  %v163 = vmul.f32 %v148, %v160
  %v164 = vsub.f32 %v156, %v162
  %v165 = vsub.f32 %v157, %v163
  %v166 = vmul.f32 %v143, %v160
  %v167 = vmul.f32 %v142, %v160
  %v168 = vadd.f32 %v135, %v166
  %v169 = vadd.f32 %v136, %v167
  %v170 = vmul.f32 %v149, %v152
  %v171 = vmul.f32 %v148, %v152
  %v172 = vadd.f32 %v168, %v170
  %v173 = vadd.f32 %v169, %v171
  %v174 = vmul.f32 %v29, %v29
  %v175 = vmul.f32 %v30, %v30
  %v176 = vmul.f32 %v31, %v31
  %v177 = vmul.f32 %v32, %v32
  %v178 = vadd.f32 %v174, %v176
  %v179 = vadd.f32 %v175, %v177
  %v180 = vadd.f32 %v178, %v179
  %181 = vadd.xlane.f32.xlu0 %v180
  %v182 = vpop.xlane.xlu0 %181
  %v183 = vrsqrt.pop %v182
  %v184 = vmul.f32 %v182, %v183
  %vm185 = vcmp.eq.f32.partialorder %v182, inf
  %v186 = vsel %vm185, %v182, %v184
  %vm187 = vcmp.eq.f32.partialorder %v182, 0.0
  %v188 = vand.u32 %v182, 2147483648
  %v189 = vsel %vm187, %v188, %v186
  %v190 = vmul.f32 %v189, 0.088388346
  %s191 = sld [smem:[#allocation2]]
  %v192 = vstv %s191
  %v193 = vmul.f32 %v190, %v192
  %v194 = vld [vmem:[%s5] sm:$0xff]
  %v195 = vld [vmem:[%s5 + $0x8] sm:$0xff]
  %v196 = vmul.f32 %v194, %v193
  %v197 = vmul.f32 %v195, %v193
  %v198 = vadd.f32 %v164, %v196
  %v199 = vadd.f32 %v165, %v197
  %200 = vst [vmem:[%s7] sm:$0xff] %v198
  %201 = vst [vmem:[%s7 + $0x8] sm:$0xff] %v199
  %v202 = vld [vmem:[%s6] sm:$0xff]
  %v203 = vld [vmem:[%s6 + $0x8] sm:$0xff]
  %v204 = vmul.f32 %v202, %v193
  %v205 = vmul.f32 %v203, %v193
  %v206 = vadd.f32 %v172, %v204
  %v207 = vadd.f32 %v173, %v205
  %208 = vst [vmem:[%s8] sm:$0xff] %v206
  %209 = vst [vmem:[%s8 + $0x8] sm:$0xff] %v207
  // Predicated region
  $region30: #{multipath_channel.1} parent=0 // pred_check
    _
  $region31: #{multipath_channel.1} parent=0 // pred_check_branch
    %211 = sbr.rel (0) target = $region33
  $region32: #{multipath_channel.1} parent=0 // pred_region
    _
  $region33: #{multipath_channel.1} parent=0 // pred_fallthru
    _
  // Predicated region
  $region34: #{multipath_channel.1} parent=0 // pred_check
    _
  $region35: #{multipath_channel.1} parent=0 // pred_check_branch
    %213 = sbr.rel (0) target = $region37
  $region36: #{multipath_channel.1} parent=0 // pred_region
    _
  $region37: #{multipath_channel.1} parent=0 // pred_fallthru
    _
  // Predicated region
  $region38: #{multipath_channel.1} parent=0 // pred_check
    _
  $region39: #{multipath_channel.1} parent=0 // pred_check_branch
    %215 = sbr.rel (0) target = $region41
  $region40: #{multipath_channel.1} parent=0 // pred_region
    _
  $region41: #{multipath_channel.1} parent=0 // pred_fallthru
    _
  // Predicated region
  $region42: #{multipath_channel.1} parent=0 // pred_check
    _
  $region43: #{multipath_channel.1} parent=0 // pred_check_branch
    %217 = sbr.rel (0) target = $region45
  $region44: #{multipath_channel.1} parent=0 // pred_region
    _
  $region45: #{multipath_channel.1} parent=0 // pred_fallthru
    _

</llo_original>
